<compile_context>
chip_gen: v5e
topology: v5e:2x2
jax: 0.10.0
libtpu: 0.0.40
codegen_flags: <defaults>
</compile_context>

<pallas_src>
import jax
import jax.numpy as jnp
import numpy as np
from jax import lax
from jax.experimental import pallas as pl
from jax.experimental.pallas import tpu as pltpu


# ---------------------------------------------------------------------------
# Pallas kernel: fused bidirectional LSTM recurrence + mean-pool + hidden2tag
# ---------------------------------------------------------------------------
def _bilstm_fused_kernel(zx_ref, whh_ref, wt_ref, bt_ref, out_ref,
                         h_ref, c_ref, s_ref):
    """zx_ref : (TC, Bp, 8*Hd)  precomputed x-projection (+bias), fused gate layout
       whh_ref: (2*Hd, 8*Hd)    block-diagonal recurrent weights (both directions)
       wt_ref : (2*Hd, tagset)  hidden2tag weight, pre-scaled by 1/T
       bt_ref : (1, tagset)     hidden2tag bias
       h/c/s  : (Bp, 2*Hd)      persistent carries: hidden, cell, sum-over-time
    """
    TC = zx_ref.shape[0]
    H2 = whh_ref.shape[0]            # 2*Hd  (forward | backward)

    t = pl.program_id(0)
    last = pl.num_programs(0) - 1

    @pl.when(t == 0)
    def _init():
        h_ref[...] = jnp.zeros_like(h_ref)
        c_ref[...] = jnp.zeros_like(c_ref)
        s_ref[...] = jnp.zeros_like(s_ref)

    whh = whh_ref[...]               # resident across the unrolled loop

    def step(i, carry):
        h, c, s = carry
        # single MXU matmul per timestep covering both directions
        z = zx_ref[i] + jnp.dot(h, whh, preferred_element_type=jnp.float32)
        # full-vreg activations (2 EUP ops on all 128 lanes), then 2*Hd-wide slices
        sig = jax.nn.sigmoid(z)
        th = jnp.tanh(z)
        gi = sig[:, 0 * H2:1 * H2]   # [i_f | i_b]
        gf = sig[:, 1 * H2:2 * H2]   # [f_f | f_b]
        gg = th[:, 2 * H2:3 * H2]    # [g_f | g_b]
        go = sig[:, 3 * H2:4 * H2]   # [o_f | o_b]
        c = gf * c + gi * gg
        h = go * jnp.tanh(c)
        return h, c, s + h

    h, c, s = lax.fori_loop(
        0, TC, step, (h_ref[...], c_ref[...], s_ref[...]), unroll=True)

    h_ref[...] = h
    c_ref[...] = c
    s_ref[...] = s

    @pl.when(t == last)
    def _finalize():
        # mean (folded into wt) + hidden2tag; no concat needed, s is already [f | b]
        out_ref[...] = (jnp.dot(s, wt_ref[...], preferred_element_type=jnp.float32)
                        + bt_ref[...])


# ---------------------------------------------------------------------------
# Wrapper
# ---------------------------------------------------------------------------
def _pick_time_chunk(T, max_chunk=16):
    for c in range(min(T, max_chunk), 0, -1):
        if T % c == 0:
            return c
    return T


def _fuse_lstm_params(params):
    """Build the fused-lane-layout weights. (One-time cost, independent of inputs.)"""
    Hd = params["whh_f"].shape[0]
    # block-diagonal recurrent weight with gate-major / direction-minor columns
    zeros = jnp.zeros((Hd, 4, Hd), jnp.float32)
    top = jnp.stack([params["whh_f"].reshape(Hd, 4, Hd), zeros], axis=2).reshape(Hd, 8 * Hd)
    bot = jnp.stack([zeros, params["whh_b"].reshape(Hd, 4, Hd)], axis=2).reshape(Hd, 8 * Hd)
    whh_fused = jnp.concatenate([top, bot], axis=0)                       # (2Hd, 8Hd)
    wih_cat = jnp.concatenate([params["wih_f"], params["wih_b"]], axis=1)  # (E, 8Hd)
    b_cat = jnp.concatenate([params["b_f"], params["b_b"]], axis=-1)       # (1, 8Hd)
    return wih_cat, b_cat, whh_fused


@jax.jit
def bilstm_forward(tokens, params):
    B, T = tokens.shape
    Hd = params["whh_f"].shape[0]
    H2 = 2 * Hd
    tagset = params["b_tag"].shape[-1]

    wih_cat, b_cat, whh_fused = _fuse_lstm_params(params)
    wt_scaled = params["w_tag"] * (1.0 / T)     # fold mean(1/T) into the projection
    bt = params["b_tag"]

    # Embedding lookup directly in time-major order (gather stays in XLA glue).
    emb_tm = params["embed"][tokens.T]          # (T, B, E)

    # Pad batch to a multiple of 8 so matmuls / VPU ops fill sublanes.
    Bp = ((B + 7) // 8) * 8
    if Bp != B:
        emb_tm = jnp.pad(emb_tm, ((0, 0), (0, Bp - B), (0, 0)))

    # Hoisted input projection: one matmul for both directions, all timesteps.
    zx = jnp.einsum("tbe,eg->tbg", emb_tm, wih_cat) + b_cat       # (T, Bp, 8Hd)
    # Rearrange into fused lane layout [i_f,i_b,f_f,f_b,g_f,g_b,o_f,o_b],
    # with the backward direction's input stream time-reversed.
    zx = zx.reshape(T, Bp, 2, 4, Hd)
    zx_fused = jnp.stack([zx[:, :, 0], zx[::-1, :, 1]], axis=3).reshape(T, Bp, 8 * Hd)

    # Stream time chunks through the grid; h/c/sum carries persist in VMEM scratch.
    TC = _pick_time_chunk(T)
    grid = (T // TC,)

    out = pl.pallas_call(
        _bilstm_fused_kernel,
        out_shape=jax.ShapeDtypeStruct((Bp, tagset), jnp.float32),
        grid_spec=pltpu.PrefetchScalarGridSpec(
            num_scalar_prefetch=0,
            grid=grid,
            in_specs=[
                pl.BlockSpec((TC, Bp, 8 * Hd), lambda t: (t, 0, 0)),   # streamed zx
                pl.BlockSpec((H2, 8 * Hd), lambda t: (0, 0)),          # resident Whh
                pl.BlockSpec((H2, tagset), lambda t: (0, 0)),          # resident Wtag
                pl.BlockSpec((1, tagset), lambda t: (0, 0)),           # resident btag
            ],
            out_specs=pl.BlockSpec((Bp, tagset), lambda t: (0, 0)),
            scratch_shapes=[pltpu.VMEM((Bp, H2), jnp.float32),   # h carry
                            pltpu.VMEM((Bp, H2), jnp.float32),   # c carry
                            pltpu.VMEM((Bp, H2), jnp.float32)],  # sum-over-time
        ),
        compiler_params=pltpu.CompilerParams(
            dimension_semantics=("arbitrary",)),
    )(zx_fused, whh_fused, wt_scaled, bt)

    return out[:B]


# ---------------------------------------------------------------------------
# Parameters & pure-JAX reference (mirrors the PyTorch module)
# ---------------------------------------------------------------------------
def init_params(key, vocab_size, embedding_dim, hidden_dim, tagset_size):
    Hd = hidden_dim // 2
    ks = jax.random.split(key, 11)
    s_lstm = 1.0 / np.sqrt(Hd)
    s_lin = 1.0 / np.sqrt(hidden_dim)

    def u(k, shape, scale):
        return jax.random.uniform(k, shape, jnp.float32, -scale, scale)

    return dict(
        embed=jax.random.normal(ks[0], (vocab_size, embedding_dim), jnp.float32),
        # forward direction (weights stored as (in, 4*Hd) = PyTorch weight.T), gate order [i,f,g,o]
        wih_f=u(ks[1], (embedding_dim, 4 * Hd), s_lstm),
        whh_f=u(ks[2], (Hd, 4 * Hd), s_lstm),
        b_f=u(ks[3], (1, 4 * Hd), s_lstm) + u(ks[4], (1, 4 * Hd), s_lstm),  # b_ih + b_hh
        # reverse direction
        wih_b=u(ks[5], (embedding_dim, 4 * Hd), s_lstm),
        whh_b=u(ks[6], (Hd, 4 * Hd), s_lstm),
        b_b=u(ks[7], (1, 4 * Hd), s_lstm) + u(ks[8], (1, 4 * Hd), s_lstm),
        # hidden2tag
        w_tag=u(ks[9], (hidden_dim, tagset_size), s_lin),
        b_tag=u(ks[10], (1, tagset_size), s_lin),
    )


def reference_forward(tokens, params):
    """Pure-JAX reference mirroring the PyTorch BiLSTM forward, for sanity checking."""
    emb = params["embed"][tokens]            # (B, T, E)
    B, T, E = emb.shape
    Hd = params["whh_f"].shape[0]

    def run_dir(xs, wih, whh, b):
        def cell(carry, x_t):
            h, c = carry
            z = x_t @ wih + h @ whh + b
            i = jax.nn.sigmoid(z[:, 0 * Hd:1 * Hd])
            f = jax.nn.sigmoid(z[:, 1 * Hd:2 * Hd])
            g = jnp.tanh(z[:, 2 * Hd:3 * Hd])
            o = jax.nn.sigmoid(z[:, 3 * Hd:4 * Hd])
            c = f * c + i * g
            h = o * jnp.tanh(c)
            return (h, c), h
        h0 = jnp.zeros((B, Hd), jnp.float32)
        _, hs = lax.scan(cell, (h0, h0), xs)
        return hs                            # (T, B, Hd)

    xs = jnp.transpose(emb, (1, 0, 2))
    hs_f = run_dir(xs, params["wih_f"], params["whh_f"], params["b_f"])
    hs_b = run_dir(xs[::-1], params["wih_b"], params["whh_b"], params["b_b"])
    mean_f = hs_f.mean(axis=0)
    mean_b = hs_b.mean(axis=0)
    feat = jnp.concatenate([mean_f, mean_b], axis=1)
    return feat @ params["w_tag"] + params["b_tag"]


if __name__ == "__main__":
    batch = 2
    seq_len = 8
    vocab_size = 50
    embedding_dim = 32
    hidden_dim = 32            # -> per-direction hidden = 16, fused gate width = 128
    tag_to_ix = {"B": 0, "I": 1, "O": 2, "<START>": 3, "<STOP>": 4}
    tagset_size = len(tag_to_ix)

    key = jax.random.PRNGKey(0)
    k_tok, k_par = jax.random.split(key)
    tokens = jax.random.randint(k_tok, (batch, seq_len), 0, vocab_size, dtype=jnp.int32)
    params = init_params(k_par, vocab_size, embedding_dim, hidden_dim, tagset_size)

    out = bilstm_forward(tokens, params)
    out = jax.block_until_ready(out)

    ref = jax.block_until_ready(reference_forward(tokens, params))
    assert out.shape == (batch, tagset_size)
    np.testing.assert_allclose(np.asarray(out), np.asarray(ref), rtol=1e-4, atol=1e-4)

    print("KERNEL_OK")
</pallas_src>

<mosaic_0001>
module attributes {stable_mosaic.version = 11 : i64} {
  func.func @_bilstm_fused_kernel(%arg0: i32, %arg1: memref<8x8x128xf32, #tpu.memory_space<vmem>>, %arg2: memref<32x128xf32, #tpu.memory_space<vmem>>, %arg3: memref<32x5xf32, #tpu.memory_space<vmem>>, %arg4: memref<1x5xf32, #tpu.memory_space<vmem>>, %arg5: memref<8x5xf32, #tpu.memory_space<vmem>>, %arg6: memref<8x32xf32, #tpu.memory_space<vmem>>, %arg7: memref<8x32xf32, #tpu.memory_space<vmem>>, %arg8: memref<8x32xf32, #tpu.memory_space<vmem>>) attributes {dimension_semantics = [#tpu.dimension_semantics<arbitrary>], iteration_bounds = array<i64: 1>, scalar_prefetch = 0 : i64, scratch_operands = 3 : i64, tpu.core_type = #tpu.core_type<tc>, window_params = [{transform_indices = @transform_0, window_bounds = array<i64: 8, 8, 128>}, {pipeline_mode = #tpu.pipeline_mode<synchronous>, transform_indices = @transform_1, window_bounds = array<i64: 32, 128>}, {pipeline_mode = #tpu.pipeline_mode<synchronous>, transform_indices = @transform_2, window_bounds = array<i64: 32, 5>}, {pipeline_mode = #tpu.pipeline_mode<synchronous>, transform_indices = @transform_3, window_bounds = array<i64: 1, 5>}, {pipeline_mode = #tpu.pipeline_mode<synchronous>, transform_indices = @transform_4, window_bounds = array<i64: 8, 5>}]} {
    %c0_i32 = arith.constant 0 : i32
    %0 = arith.cmpi eq, %arg0, %c0_i32 : i32
    %1 = arith.extui %0 : i1 to i32
    %c0_i32_0 = arith.constant 0 : i32
    %2 = arith.cmpi ne, %1, %c0_i32_0 : i32
    scf.if %2 {
      %cst_48 = arith.constant 0.000000e+00 : f32
      %181 = vector.broadcast %cst_48 : f32 to vector<8x32xf32>
      %c0_49 = arith.constant 0 : index
      %c0_50 = arith.constant 0 : index
      %182 = vector.load %arg6[%c0_49, %c0_50] : memref<8x32xf32, #tpu.memory_space<vmem>>, vector<8x32xf32>
      tpu.vector_store %arg6[%c0_49, %c0_50], %181 {strides = array<i32>} : memref<8x32xf32, #tpu.memory_space<vmem>>, vector<8x32xf32>,
      %cst_51 = arith.constant 0.000000e+00 : f32
      %183 = vector.broadcast %cst_51 : f32 to vector<8x32xf32>
      %c0_52 = arith.constant 0 : index
      %c0_53 = arith.constant 0 : index
      %184 = vector.load %arg7[%c0_52, %c0_53] : memref<8x32xf32, #tpu.memory_space<vmem>>, vector<8x32xf32>
      tpu.vector_store %arg7[%c0_52, %c0_53], %183 {strides = array<i32>} : memref<8x32xf32, #tpu.memory_space<vmem>>, vector<8x32xf32>,
      %cst_54 = arith.constant 0.000000e+00 : f32
      %185 = vector.broadcast %cst_54 : f32 to vector<8x32xf32>
      %c0_55 = arith.constant 0 : index
      %c0_56 = arith.constant 0 : index
      %186 = vector.load %arg8[%c0_55, %c0_56] : memref<8x32xf32, #tpu.memory_space<vmem>>, vector<8x32xf32>
      tpu.vector_store %arg8[%c0_55, %c0_56], %185 {strides = array<i32>} : memref<8x32xf32, #tpu.memory_space<vmem>>, vector<8x32xf32>,
    } else {
    }
    %c0 = arith.constant 0 : index
    %c0_1 = arith.constant 0 : index
    %3 = vector.load %arg2[%c0, %c0_1] : memref<32x128xf32, #tpu.memory_space<vmem>>, vector<32x128xf32>
    %c0_2 = arith.constant 0 : index
    %c0_3 = arith.constant 0 : index
    %4 = vector.load %arg6[%c0_2, %c0_3] : memref<8x32xf32, #tpu.memory_space<vmem>>, vector<8x32xf32>
    %c0_4 = arith.constant 0 : index
    %c0_5 = arith.constant 0 : index
    %5 = vector.load %arg7[%c0_4, %c0_5] : memref<8x32xf32, #tpu.memory_space<vmem>>, vector<8x32xf32>
    %c0_6 = arith.constant 0 : index
    %c0_7 = arith.constant 0 : index
    %6 = vector.load %arg8[%c0_6, %c0_7] : memref<8x32xf32, #tpu.memory_space<vmem>>, vector<8x32xf32>
    %c0_i32_8 = arith.constant 0 : i32
    %7 = arith.index_cast %c0_i32_8 : i32 to index
    %c0_9 = arith.constant 0 : index
    %c0_10 = arith.constant 0 : index
    %8 = vector.load %arg1[%7, %c0_9, %c0_10] : memref<8x8x128xf32, #tpu.memory_space<vmem>>, vector<1x8x128xf32>
    %9 = vector.shape_cast %8 : vector<1x8x128xf32> to vector<8x128xf32>
    %cst = arith.constant dense<0.000000e+00> : vector<8x128xf32>
    %10 = tpu.matmul %4, %3, %cst {dimension_numbers = #tpu.dot_dimension_numbers<[1], [0], [0], [1], [0, 0, 1, 1], [], []>} : vector<8x32xf32>, vector<32x128xf32>, vector<8x128xf32> -> vector<8x128xf32>
    %11 = arith.addf %9, %10 : vector<8x128xf32>
    %12 = arith.negf %11 : vector<8x128xf32>
    %13 = math.exp %12 : vector<8x128xf32>
    %cst_11 = arith.constant 1.000000e+00 : f32
    %14 = vector.broadcast %cst_11 : f32 to vector<8x128xf32>
    %15 = arith.addf %14, %13 : vector<8x128xf32>
    %16 = arith.divf %14, %15 : vector<8x128xf32>
    %17 = math.tanh %11 : vector<8x128xf32>
    %18 = vector.extract_strided_slice %16 {offsets = [0, 0], sizes = [8, 32], strides = [1, 1]} : vector<8x128xf32> to vector<8x32xf32>
    %19 = vector.extract_strided_slice %16 {offsets = [0, 32], sizes = [8, 32], strides = [1, 1]} : vector<8x128xf32> to vector<8x32xf32>
    %20 = vector.extract_strided_slice %17 {offsets = [0, 64], sizes = [8, 32], strides = [1, 1]} : vector<8x128xf32> to vector<8x32xf32>
    %21 = vector.extract_strided_slice %16 {offsets = [0, 96], sizes = [8, 32], strides = [1, 1]} : vector<8x128xf32> to vector<8x32xf32>
    %22 = arith.mulf %19, %5 : vector<8x32xf32>
    %23 = arith.mulf %18, %20 : vector<8x32xf32>
    %24 = arith.addf %22, %23 : vector<8x32xf32>
    %25 = math.tanh %24 : vector<8x32xf32>
    %26 = arith.mulf %21, %25 : vector<8x32xf32>
    %27 = arith.addf %6, %26 : vector<8x32xf32>
    %c1_i32 = arith.constant 1 : i32
    %28 = arith.index_cast %c1_i32 : i32 to index
    %c0_12 = arith.constant 0 : index
    %c0_13 = arith.constant 0 : index
    %29 = vector.load %arg1[%28, %c0_12, %c0_13] : memref<8x8x128xf32, #tpu.memory_space<vmem>>, vector<1x8x128xf32>
    %30 = vector.shape_cast %29 : vector<1x8x128xf32> to vector<8x128xf32>
    %cst_14 = arith.constant dense<0.000000e+00> : vector<8x128xf32>
    %31 = tpu.matmul %26, %3, %cst_14 {dimension_numbers = #tpu.dot_dimension_numbers<[1], [0], [0], [1], [0, 0, 1, 1], [], []>} : vector<8x32xf32>, vector<32x128xf32>, vector<8x128xf32> -> vector<8x128xf32>
    %32 = arith.addf %30, %31 : vector<8x128xf32>
    %33 = arith.negf %32 : vector<8x128xf32>
    %34 = math.exp %33 : vector<8x128xf32>
    %cst_15 = arith.constant 1.000000e+00 : f32
    %35 = vector.broadcast %cst_15 : f32 to vector<8x128xf32>
    %36 = arith.addf %35, %34 : vector<8x128xf32>
    %37 = arith.divf %35, %36 : vector<8x128xf32>
    %38 = math.tanh %32 : vector<8x128xf32>
    %39 = vector.extract_strided_slice %37 {offsets = [0, 0], sizes = [8, 32], strides = [1, 1]} : vector<8x128xf32> to vector<8x32xf32>
    %40 = vector.extract_strided_slice %37 {offsets = [0, 32], sizes = [8, 32], strides = [1, 1]} : vector<8x128xf32> to vector<8x32xf32>
    %41 = vector.extract_strided_slice %38 {offsets = [0, 64], sizes = [8, 32], strides = [1, 1]} : vector<8x128xf32> to vector<8x32xf32>
    %42 = vector.extract_strided_slice %37 {offsets = [0, 96], sizes = [8, 32], strides = [1, 1]} : vector<8x128xf32> to vector<8x32xf32>
    %43 = arith.mulf %40, %24 : vector<8x32xf32>
    %44 = arith.mulf %39, %41 : vector<8x32xf32>
    %45 = arith.addf %43, %44 : vector<8x32xf32>
    %46 = math.tanh %45 : vector<8x32xf32>
    %47 = arith.mulf %42, %46 : vector<8x32xf32>
    %48 = arith.addf %27, %47 : vector<8x32xf32>
    %c2_i32 = arith.constant 2 : i32
    %49 = arith.index_cast %c2_i32 : i32 to index
    %c0_16 = arith.constant 0 : index
    %c0_17 = arith.constant 0 : index
    %50 = vector.load %arg1[%49, %c0_16, %c0_17] : memref<8x8x128xf32, #tpu.memory_space<vmem>>, vector<1x8x128xf32>
    %51 = vector.shape_cast %50 : vector<1x8x128xf32> to vector<8x128xf32>
    %cst_18 = arith.constant dense<0.000000e+00> : vector<8x128xf32>
    %52 = tpu.matmul %47, %3, %cst_18 {dimension_numbers = #tpu.dot_dimension_numbers<[1], [0], [0], [1], [0, 0, 1, 1], [], []>} : vector<8x32xf32>, vector<32x128xf32>, vector<8x128xf32> -> vector<8x128xf32>
    %53 = arith.addf %51, %52 : vector<8x128xf32>
    %54 = arith.negf %53 : vector<8x128xf32>
    %55 = math.exp %54 : vector<8x128xf32>
    %cst_19 = arith.constant 1.000000e+00 : f32
    %56 = vector.broadcast %cst_19 : f32 to vector<8x128xf32>
    %57 = arith.addf %56, %55 : vector<8x128xf32>
    %58 = arith.divf %56, %57 : vector<8x128xf32>
    %59 = math.tanh %53 : vector<8x128xf32>
    %60 = vector.extract_strided_slice %58 {offsets = [0, 0], sizes = [8, 32], strides = [1, 1]} : vector<8x128xf32> to vector<8x32xf32>
    %61 = vector.extract_strided_slice %58 {offsets = [0, 32], sizes = [8, 32], strides = [1, 1]} : vector<8x128xf32> to vector<8x32xf32>
    %62 = vector.extract_strided_slice %59 {offsets = [0, 64], sizes = [8, 32], strides = [1, 1]} : vector<8x128xf32> to vector<8x32xf32>
    %63 = vector.extract_strided_slice %58 {offsets = [0, 96], sizes = [8, 32], strides = [1, 1]} : vector<8x128xf32> to vector<8x32xf32>
    %64 = arith.mulf %61, %45 : vector<8x32xf32>
    %65 = arith.mulf %60, %62 : vector<8x32xf32>
    %66 = arith.addf %64, %65 : vector<8x32xf32>
    %67 = math.tanh %66 : vector<8x32xf32>
    %68 = arith.mulf %63, %67 : vector<8x32xf32>
    %69 = arith.addf %48, %68 : vector<8x32xf32>
    %c3_i32 = arith.constant 3 : i32
    %70 = arith.index_cast %c3_i32 : i32 to index
    %c0_20 = arith.constant 0 : index
    %c0_21 = arith.constant 0 : index
    %71 = vector.load %arg1[%70, %c0_20, %c0_21] : memref<8x8x128xf32, #tpu.memory_space<vmem>>, vector<1x8x128xf32>
    %72 = vector.shape_cast %71 : vector<1x8x128xf32> to vector<8x128xf32>
    %cst_22 = arith.constant dense<0.000000e+00> : vector<8x128xf32>
    %73 = tpu.matmul %68, %3, %cst_22 {dimension_numbers = #tpu.dot_dimension_numbers<[1], [0], [0], [1], [0, 0, 1, 1], [], []>} : vector<8x32xf32>, vector<32x128xf32>, vector<8x128xf32> -> vector<8x128xf32>
    %74 = arith.addf %72, %73 : vector<8x128xf32>
    %75 = arith.negf %74 : vector<8x128xf32>
    %76 = math.exp %75 : vector<8x128xf32>
    %cst_23 = arith.constant 1.000000e+00 : f32
    %77 = vector.broadcast %cst_23 : f32 to vector<8x128xf32>
    %78 = arith.addf %77, %76 : vector<8x128xf32>
    %79 = arith.divf %77, %78 : vector<8x128xf32>
    %80 = math.tanh %74 : vector<8x128xf32>
    %81 = vector.extract_strided_slice %79 {offsets = [0, 0], sizes = [8, 32], strides = [1, 1]} : vector<8x128xf32> to vector<8x32xf32>
    %82 = vector.extract_strided_slice %79 {offsets = [0, 32], sizes = [8, 32], strides = [1, 1]} : vector<8x128xf32> to vector<8x32xf32>
    %83 = vector.extract_strided_slice %80 {offsets = [0, 64], sizes = [8, 32], strides = [1, 1]} : vector<8x128xf32> to vector<8x32xf32>
    %84 = vector.extract_strided_slice %79 {offsets = [0, 96], sizes = [8, 32], strides = [1, 1]} : vector<8x128xf32> to vector<8x32xf32>
    %85 = arith.mulf %82, %66 : vector<8x32xf32>
    %86 = arith.mulf %81, %83 : vector<8x32xf32>
    %87 = arith.addf %85, %86 : vector<8x32xf32>
    %88 = math.tanh %87 : vector<8x32xf32>
    %89 = arith.mulf %84, %88 : vector<8x32xf32>
    %90 = arith.addf %69, %89 : vector<8x32xf32>
    %c4_i32 = arith.constant 4 : i32
    %91 = arith.index_cast %c4_i32 : i32 to index
    %c0_24 = arith.constant 0 : index
    %c0_25 = arith.constant 0 : index
    %92 = vector.load %arg1[%91, %c0_24, %c0_25] : memref<8x8x128xf32, #tpu.memory_space<vmem>>, vector<1x8x128xf32>
    %93 = vector.shape_cast %92 : vector<1x8x128xf32> to vector<8x128xf32>
    %cst_26 = arith.constant dense<0.000000e+00> : vector<8x128xf32>
    %94 = tpu.matmul %89, %3, %cst_26 {dimension_numbers = #tpu.dot_dimension_numbers<[1], [0], [0], [1], [0, 0, 1, 1], [], []>} : vector<8x32xf32>, vector<32x128xf32>, vector<8x128xf32> -> vector<8x128xf32>
    %95 = arith.addf %93, %94 : vector<8x128xf32>
    %96 = arith.negf %95 : vector<8x128xf32>
    %97 = math.exp %96 : vector<8x128xf32>
    %cst_27 = arith.constant 1.000000e+00 : f32
    %98 = vector.broadcast %cst_27 : f32 to vector<8x128xf32>
    %99 = arith.addf %98, %97 : vector<8x128xf32>
    %100 = arith.divf %98, %99 : vector<8x128xf32>
    %101 = math.tanh %95 : vector<8x128xf32>
    %102 = vector.extract_strided_slice %100 {offsets = [0, 0], sizes = [8, 32], strides = [1, 1]} : vector<8x128xf32> to vector<8x32xf32>
    %103 = vector.extract_strided_slice %100 {offsets = [0, 32], sizes = [8, 32], strides = [1, 1]} : vector<8x128xf32> to vector<8x32xf32>
    %104 = vector.extract_strided_slice %101 {offsets = [0, 64], sizes = [8, 32], strides = [1, 1]} : vector<8x128xf32> to vector<8x32xf32>
    %105 = vector.extract_strided_slice %100 {offsets = [0, 96], sizes = [8, 32], strides = [1, 1]} : vector<8x128xf32> to vector<8x32xf32>
    %106 = arith.mulf %103, %87 : vector<8x32xf32>
    %107 = arith.mulf %102, %104 : vector<8x32xf32>
    %108 = arith.addf %106, %107 : vector<8x32xf32>
    %109 = math.tanh %108 : vector<8x32xf32>
    %110 = arith.mulf %105, %109 : vector<8x32xf32>
    %111 = arith.addf %90, %110 : vector<8x32xf32>
    %c5_i32 = arith.constant 5 : i32
    %112 = arith.index_cast %c5_i32 : i32 to index
    %c0_28 = arith.constant 0 : index
    %c0_29 = arith.constant 0 : index
    %113 = vector.load %arg1[%112, %c0_28, %c0_29] : memref<8x8x128xf32, #tpu.memory_space<vmem>>, vector<1x8x128xf32>
    %114 = vector.shape_cast %113 : vector<1x8x128xf32> to vector<8x128xf32>
    %cst_30 = arith.constant dense<0.000000e+00> : vector<8x128xf32>
    %115 = tpu.matmul %110, %3, %cst_30 {dimension_numbers = #tpu.dot_dimension_numbers<[1], [0], [0], [1], [0, 0, 1, 1], [], []>} : vector<8x32xf32>, vector<32x128xf32>, vector<8x128xf32> -> vector<8x128xf32>
    %116 = arith.addf %114, %115 : vector<8x128xf32>
    %117 = arith.negf %116 : vector<8x128xf32>
    %118 = math.exp %117 : vector<8x128xf32>
    %cst_31 = arith.constant 1.000000e+00 : f32
    %119 = vector.broadcast %cst_31 : f32 to vector<8x128xf32>
    %120 = arith.addf %119, %118 : vector<8x128xf32>
    %121 = arith.divf %119, %120 : vector<8x128xf32>
    %122 = math.tanh %116 : vector<8x128xf32>
    %123 = vector.extract_strided_slice %121 {offsets = [0, 0], sizes = [8, 32], strides = [1, 1]} : vector<8x128xf32> to vector<8x32xf32>
    %124 = vector.extract_strided_slice %121 {offsets = [0, 32], sizes = [8, 32], strides = [1, 1]} : vector<8x128xf32> to vector<8x32xf32>
    %125 = vector.extract_strided_slice %122 {offsets = [0, 64], sizes = [8, 32], strides = [1, 1]} : vector<8x128xf32> to vector<8x32xf32>
    %126 = vector.extract_strided_slice %121 {offsets = [0, 96], sizes = [8, 32], strides = [1, 1]} : vector<8x128xf32> to vector<8x32xf32>
    %127 = arith.mulf %124, %108 : vector<8x32xf32>
    %128 = arith.mulf %123, %125 : vector<8x32xf32>
    %129 = arith.addf %127, %128 : vector<8x32xf32>
    %130 = math.tanh %129 : vector<8x32xf32>
    %131 = arith.mulf %126, %130 : vector<8x32xf32>
    %132 = arith.addf %111, %131 : vector<8x32xf32>
    %c6_i32 = arith.constant 6 : i32
    %133 = arith.index_cast %c6_i32 : i32 to index
    %c0_32 = arith.constant 0 : index
    %c0_33 = arith.constant 0 : index
    %134 = vector.load %arg1[%133, %c0_32, %c0_33] : memref<8x8x128xf32, #tpu.memory_space<vmem>>, vector<1x8x128xf32>
    %135 = vector.shape_cast %134 : vector<1x8x128xf32> to vector<8x128xf32>
    %cst_34 = arith.constant dense<0.000000e+00> : vector<8x128xf32>
    %136 = tpu.matmul %131, %3, %cst_34 {dimension_numbers = #tpu.dot_dimension_numbers<[1], [0], [0], [1], [0, 0, 1, 1], [], []>} : vector<8x32xf32>, vector<32x128xf32>, vector<8x128xf32> -> vector<8x128xf32>
    %137 = arith.addf %135, %136 : vector<8x128xf32>
    %138 = arith.negf %137 : vector<8x128xf32>
    %139 = math.exp %138 : vector<8x128xf32>
    %cst_35 = arith.constant 1.000000e+00 : f32
    %140 = vector.broadcast %cst_35 : f32 to vector<8x128xf32>
    %141 = arith.addf %140, %139 : vector<8x128xf32>
    %142 = arith.divf %140, %141 : vector<8x128xf32>
    %143 = math.tanh %137 : vector<8x128xf32>
    %144 = vector.extract_strided_slice %142 {offsets = [0, 0], sizes = [8, 32], strides = [1, 1]} : vector<8x128xf32> to vector<8x32xf32>
    %145 = vector.extract_strided_slice %142 {offsets = [0, 32], sizes = [8, 32], strides = [1, 1]} : vector<8x128xf32> to vector<8x32xf32>
    %146 = vector.extract_strided_slice %143 {offsets = [0, 64], sizes = [8, 32], strides = [1, 1]} : vector<8x128xf32> to vector<8x32xf32>
    %147 = vector.extract_strided_slice %142 {offsets = [0, 96], sizes = [8, 32], strides = [1, 1]} : vector<8x128xf32> to vector<8x32xf32>
    %148 = arith.mulf %145, %129 : vector<8x32xf32>
    %149 = arith.mulf %144, %146 : vector<8x32xf32>
    %150 = arith.addf %148, %149 : vector<8x32xf32>
    %151 = math.tanh %150 : vector<8x32xf32>
    %152 = arith.mulf %147, %151 : vector<8x32xf32>
    %153 = arith.addf %132, %152 : vector<8x32xf32>
    %c7_i32 = arith.constant 7 : i32
    %154 = arith.index_cast %c7_i32 : i32 to index
    %c0_36 = arith.constant 0 : index
    %c0_37 = arith.constant 0 : index
    %155 = vector.load %arg1[%154, %c0_36, %c0_37] : memref<8x8x128xf32, #tpu.memory_space<vmem>>, vector<1x8x128xf32>
    %156 = vector.shape_cast %155 : vector<1x8x128xf32> to vector<8x128xf32>
    %cst_38 = arith.constant dense<0.000000e+00> : vector<8x128xf32>
    %157 = tpu.matmul %152, %3, %cst_38 {dimension_numbers = #tpu.dot_dimension_numbers<[1], [0], [0], [1], [0, 0, 1, 1], [], []>} : vector<8x32xf32>, vector<32x128xf32>, vector<8x128xf32> -> vector<8x128xf32>
    %158 = arith.addf %156, %157 : vector<8x128xf32>
    %159 = arith.negf %158 : vector<8x128xf32>
    %160 = math.exp %159 : vector<8x128xf32>
    %cst_39 = arith.constant 1.000000e+00 : f32
    %161 = vector.broadcast %cst_39 : f32 to vector<8x128xf32>
    %162 = arith.addf %161, %160 : vector<8x128xf32>
    %163 = arith.divf %161, %162 : vector<8x128xf32>
    %164 = math.tanh %158 : vector<8x128xf32>
    %165 = vector.extract_strided_slice %163 {offsets = [0, 0], sizes = [8, 32], strides = [1, 1]} : vector<8x128xf32> to vector<8x32xf32>
    %166 = vector.extract_strided_slice %163 {offsets = [0, 32], sizes = [8, 32], strides = [1, 1]} : vector<8x128xf32> to vector<8x32xf32>
    %167 = vector.extract_strided_slice %164 {offsets = [0, 64], sizes = [8, 32], strides = [1, 1]} : vector<8x128xf32> to vector<8x32xf32>
    %168 = vector.extract_strided_slice %163 {offsets = [0, 96], sizes = [8, 32], strides = [1, 1]} : vector<8x128xf32> to vector<8x32xf32>
    %169 = arith.mulf %166, %150 : vector<8x32xf32>
    %170 = arith.mulf %165, %167 : vector<8x32xf32>
    %171 = arith.addf %169, %170 : vector<8x32xf32>
    %172 = math.tanh %171 : vector<8x32xf32>
    %173 = arith.mulf %168, %172 : vector<8x32xf32>
    %174 = arith.addf %153, %173 : vector<8x32xf32>
    %c8_i32 = arith.constant 8 : i32
    %c0_40 = arith.constant 0 : index
    %c0_41 = arith.constant 0 : index
    %175 = vector.load %arg6[%c0_40, %c0_41] : memref<8x32xf32, #tpu.memory_space<vmem>>, vector<8x32xf32>
    tpu.vector_store %arg6[%c0_40, %c0_41], %173 {strides = array<i32>} : memref<8x32xf32, #tpu.memory_space<vmem>>, vector<8x32xf32>,
    %c0_42 = arith.constant 0 : index
    %c0_43 = arith.constant 0 : index
    %176 = vector.load %arg7[%c0_42, %c0_43] : memref<8x32xf32, #tpu.memory_space<vmem>>, vector<8x32xf32>
    tpu.vector_store %arg7[%c0_42, %c0_43], %171 {strides = array<i32>} : memref<8x32xf32, #tpu.memory_space<vmem>>, vector<8x32xf32>,
    %c0_44 = arith.constant 0 : index
    %c0_45 = arith.constant 0 : index
    %177 = vector.load %arg8[%c0_44, %c0_45] : memref<8x32xf32, #tpu.memory_space<vmem>>, vector<8x32xf32>
    tpu.vector_store %arg8[%c0_44, %c0_45], %174 {strides = array<i32>} : memref<8x32xf32, #tpu.memory_space<vmem>>, vector<8x32xf32>,
    %c0_i32_46 = arith.constant 0 : i32
    %178 = arith.cmpi eq, %arg0, %c0_i32_46 : i32
    %179 = arith.extui %178 : i1 to i32
    %c0_i32_47 = arith.constant 0 : i32
    %180 = arith.cmpi ne, %179, %c0_i32_47 : i32
    scf.if %180 {
      %c0_48 = arith.constant 0 : index
      %c0_49 = arith.constant 0 : index
      %181 = vector.load %arg3[%c0_48, %c0_49] : memref<32x5xf32, #tpu.memory_space<vmem>>, vector<32x5xf32>
      %cst_50 = arith.constant dense<0.000000e+00> : vector<8x5xf32>
      %182 = tpu.matmul %174, %181, %cst_50 {dimension_numbers = #tpu.dot_dimension_numbers<[1], [0], [0], [1], [0, 0, 1, 1], [], []>} : vector<8x32xf32>, vector<32x5xf32>, vector<8x5xf32> -> vector<8x5xf32>
      %c0_51 = arith.constant 0 : index
      %c0_52 = arith.constant 0 : index
      %183 = vector.load %arg4[%c0_51, %c0_52] : memref<1x5xf32, #tpu.memory_space<vmem>>, vector<1x5xf32>
      %184 = vector.broadcast %183 : vector<1x5xf32> to vector<8x5xf32>
      %185 = arith.addf %182, %184 : vector<8x5xf32>
      %c0_53 = arith.constant 0 : index
      %c0_54 = arith.constant 0 : index
      %186 = vector.load %arg5[%c0_53, %c0_54] : memref<8x5xf32, #tpu.memory_space<vmem>>, vector<8x5xf32>
      tpu.vector_store %arg5[%c0_53, %c0_54], %185 {strides = array<i32>} : memref<8x5xf32, #tpu.memory_space<vmem>>, vector<8x5xf32>,
    } else {
    }
    return
  }
  func.func @transform_0(%arg0: i32) -> (i32, i32, i32) {
    %c0_i32 = arith.constant 0 : i32
    %c0_i32_0 = arith.constant 0 : i32
    %c0_i32_1 = arith.constant 0 : i32
    return %arg0, %c0_i32, %c0_i32_0 : i32, i32, i32
  }
  func.func @transform_1(%arg0: i32) -> (i32, i32) {
    %c0_i32 = arith.constant 0 : i32
    %c0_i32_0 = arith.constant 0 : i32
    %c0_i32_1 = arith.constant 0 : i32
    return %c0_i32, %c0_i32_0 : i32, i32
  }
  func.func @transform_2(%arg0: i32) -> (i32, i32) {
    %c0_i32 = arith.constant 0 : i32
    %c0_i32_0 = arith.constant 0 : i32
    %c0_i32_1 = arith.constant 0 : i32
    return %c0_i32, %c0_i32_0 : i32, i32
  }
  func.func @transform_3(%arg0: i32) -> (i32, i32) {
    %c0_i32 = arith.constant 0 : i32
    %c0_i32_0 = arith.constant 0 : i32
    %c0_i32_1 = arith.constant 0 : i32
    return %c0_i32, %c0_i32_0 : i32, i32
  }
  func.func @transform_4(%arg0: i32) -> (i32, i32) {
    %c0_i32 = arith.constant 0 : i32
    %c0_i32_0 = arith.constant 0 : i32
    %c0_i32_1 = arith.constant 0 : i32
    return %c0_i32, %c0_i32_0 : i32, i32
  }
}

</mosaic_0001>

<llo_original>
// kernel: bilstm_forward.1
$region0: #{bilstm_forward.1}
  #allocation0 [shape = 'u32[]', space=smem, size = 0x4, offset = 0x4, fixed_abs, tag = 'smem constant byte address 0x4 - core index']
  #allocation1 [shape = 'u32[72,128]{1,0:T(1,128)}', space=vmem, size = 0x9000, scoped, tag = 'internal scratch']
  #allocation2 [shape = 'f32[8,32]{1,0:T(8,128)}', space=vmem, size = 0x1000, scoped, tag = 'scratch operand']
  #allocation3 [shape = 'f32[8,32]{1,0:T(8,128)}', space=vmem, size = 0x1000, scoped, tag = 'scratch operand']
  #allocation4 [shape = 'f32[8,32]{1,0:T(8,128)}', space=vmem, size = 0x1000, scoped, tag = 'scratch operand']
  %s0 = inlined_call_operand.vmem [shape: f32[8,8,128], index: 0, kind: input, shape index: {}]
  %s1 = inlined_call_operand.vmem [shape: f32[32,128], index: 1, kind: input, shape index: {}]
  %s2 = inlined_call_operand.vmem [shape: f32[32,5], index: 2, kind: input, shape index: {}]
  %s3 = inlined_call_operand.vmem [shape: f32[1,5], index: 3, kind: input, shape index: {}]
  %s4 = inlined_call_operand.vmem [shape: f32[8,5], index: 4, kind: output, shape index: {}]
  %s5 = sld [smem:[#allocation0]]
  $region34: #{bilstm_forward.1} parent=0
    _
  %s7 = ssub.s32 1, %s5
  %s8 = scalar_select 0, %s7, %s5
  // Predicated region
  $region2: #{bilstm_forward.1} parent=0 // pred_check
    _
  $region3: #{bilstm_forward.1} parent=0 // pred_check_branch
    %10 = sbr.rel (0) target = $region5
  $region4: #{bilstm_forward.1} parent=0 // pred_region
    _
  $region5: #{bilstm_forward.1} parent=0 // pred_fallthru
    _
  // Predicated region
  $region6: #{bilstm_forward.1} parent=0 // pred_check
    _
  $region7: #{bilstm_forward.1} parent=0 // pred_check_branch
    %12 = sbr.rel (0) target = $region9
  $region8: #{bilstm_forward.1} parent=0 // pred_region
    _
  $region9: #{bilstm_forward.1} parent=0 // pred_fallthru
    _
  // Predicated region
  $region10: #{bilstm_forward.1} parent=0 // pred_check
    _
  $region11: #{bilstm_forward.1} parent=0 // pred_check_branch
    %14 = sbr.rel (0) target = $region13
  $region12: #{bilstm_forward.1} parent=0 // pred_region
    _
  $region13: #{bilstm_forward.1} parent=0 // pred_fallthru
    _
  // Predicated region
  $region14: #{bilstm_forward.1} parent=0 // pred_check
    _
  $region15: #{bilstm_forward.1} parent=0 // pred_check_branch
    %16 = sbr.rel (0) target = $region17
  $region16: #{bilstm_forward.1} parent=0 // pred_region
    _
  $region17: #{bilstm_forward.1} parent=0 // pred_fallthru
    _
  %p17 = scmp.eq.s32.totalorder 0, 0
  // Predicated region
  $region18: #{bilstm_forward.1} parent=0 // pred_check
    %p18 = pneg %p17
  $region19: #{bilstm_forward.1} parent=0 // pred_check_branch
    %20 = sbr.rel (%p18) target = $region21
  $region20: #{bilstm_forward.1} parent=0 // pred_region
    %vm21 = vcmask 261120
    %22 = vst.msk [vmem:[#allocation2] sm:$0xff] %vm21, 0.0
    %23 = vst.msk [vmem:[#allocation3] sm:$0xff] %vm21, 0.0
    %24 = vst.msk [vmem:[#allocation4] sm:$0xff] %vm21, 0.0
  $region21: #{bilstm_forward.1} parent=0 // pred_fallthru
    _
  %v25 = vld [vmem:[%s1] sm:$0xff]
  %v26 = vld [vmem:[%s1 + $0x8] sm:$0xff]
  %v27 = vld [vmem:[%s1 + $0x10] sm:$0xff]
  %v28 = vld [vmem:[%s1 + $0x18] sm:$0xff]
  %v29 = vld [vmem:[#allocation2] sm:$0xff]
  %v30 = vld [vmem:[#allocation3] sm:$0xff]
  %v31 = vld [vmem:[#allocation4] sm:$0xff]
  %v32 = vld [vmem:[%s0] sm:$0xff]
  %vm33 = vcmask 261120
  %v35 = vsel %vm33, %v29, 0
  %37 = vmatpush.msra.mxu0 0.0
  %38 = vmatpush.msra.mxu0 0.0
  %39 = vmatpush.msra.mxu0 0.0
  %40 = vmatpush.msra.mxu0 0.0
  %41 = vmatpush.msra.mxu0 0.0
  %42 = vmatpush.msra.mxu0 0.0
  %43 = vmatpush.msra.mxu0 0.0
  %44 = vmatpush.msra.mxu0 0.0
  %45 = vmatpush.msra.mxu0 0.0
  %46 = vmatpush.msra.mxu0 0.0
  %47 = vmatpush.msra.mxu0 0.0
  %48 = vmatpush.msra.mxu0 0.0
  %49 = vmatpush.msra.mxu0 %v28
  %50 = vmatpush.msra.mxu0 %v27
  %51 = vmatpush.msra.mxu0 %v26
  %52 = vmatpush.msra.mxu0 %v25
  %53 = vmatmul.f32.gmra.mxu0 %v35
  %v54 = vpop.f32.mrf.mxu0
  %v55 = vadd.f32 0.0, %v54
  %56 = vdwg.mxu0
  %v57 = vadd.f32 %v32, %v55
  %v58 = vxor.u32 %v57, 2147483648
  %v59 = vmul.f32 %v58, 1.442695
  %v60 = vpow.pop %v59
  %v61 = vadd.f32 %v60, 1.0
  %v62 = vrcp.pop %v61
  %v63 = vmul.f32 %v61, %v62
  %v64 = vsub.f32 1.0, %v63
  %v65 = vmul.f32 %v62, %v64
  %v66 = vadd.f32 %v62, %v65
  %vm67 = vweird.f32 %v61
  %vm68 = vweird.f32 %v62
  %vm69 = vmor %vm67, %vm68
  %v70 = vsel %vm69, %v62, %v66
  %v71 = vand.u32 2147483647, %v61
  %vm72 = vcmp.eq.f32.partialorder %v71, 8.507059e+37
  %v73 = vand.u32 %v61, 2147483648
  %v74 = vor.u32 1.1754944e-38, %v73
  %v75 = vsel %vm72, %v74, %v70
  %v76 = vmul.f32 1.0, %v75
  %v77 = vtanh.pop %v57
  %79 = vrot.lane.b32.xlu0 %v30, 32
  %v80 = vpop.permute.xlu0 %79
  %v82 = vmul.f32 %v76, %v80
  %84 = vrot.lane.b32.xlu0 %v77, 64
  %v85 = vpop.permute.xlu0 %84
  %v87 = vmul.f32 %v76, %v85
  %89 = vrot.lane.b32.xlu0 %v87, 32
  %v90 = vpop.permute.xlu0 %89
  %v92 = vadd.f32 %v82, %v90
  %v93 = vtanh.pop %v92
  %95 = vrot.lane.b32.xlu0 %v93, 64
  %v96 = vpop.permute.xlu0 %95
  %v98 = vmul.f32 %v76, %v96
  %100 = vrot.lane.b32.xlu0 %v98, 32
  %v101 = vpop.permute.xlu0 %100
  %v103 = vadd.f32 %v31, %v101
  %s104 = scalar_lea.vmem %s0, 8
  %v105 = vld [vmem:[%s104] sm:$0xff]
  %v106 = vsel %vm33, %v101, 0
  %108 = vmatpush.msra.mxu0 0.0
  %109 = vmatpush.msra.mxu0 0.0
  %110 = vmatpush.msra.mxu0 0.0
  %111 = vmatpush.msra.mxu0 0.0
  %112 = vmatpush.msra.mxu0 0.0
  %113 = vmatpush.msra.mxu0 0.0
  %114 = vmatpush.msra.mxu0 0.0
  %115 = vmatpush.msra.mxu0 0.0
  %116 = vmatpush.msra.mxu0 0.0
  %117 = vmatpush.msra.mxu0 0.0
  %118 = vmatpush.msra.mxu0 0.0
  %119 = vmatpush.msra.mxu0 0.0
  %120 = vmatpush.msra.mxu0 %v28
  %121 = vmatpush.msra.mxu0 %v27
  %122 = vmatpush.msra.mxu0 %v26
  %123 = vmatpush.msra.mxu0 %v25
  %124 = vmatmul.f32.gmra.mxu0 %v106
  %v125 = vpop.f32.mrf.mxu0
  %v126 = vadd.f32 0.0, %v125
  %127 = vdwg.mxu0
  %v128 = vadd.f32 %v105, %v126
  %v129 = vxor.u32 %v128, 2147483648
  %v130 = vmul.f32 %v129, 1.442695
  %v131 = vpow.pop %v130
  %v132 = vadd.f32 %v131, 1.0
  %v133 = vrcp.pop %v132
  %v134 = vmul.f32 %v132, %v133
  %v135 = vsub.f32 1.0, %v134
  %v136 = vmul.f32 %v133, %v135
  %v137 = vadd.f32 %v133, %v136
  %vm138 = vweird.f32 %v132
  %vm139 = vweird.f32 %v133
  %vm140 = vmor %vm138, %vm139
  %v141 = vsel %vm140, %v133, %v137
  %v142 = vand.u32 2147483647, %v132
  %vm143 = vcmp.eq.f32.partialorder %v142, 8.507059e+37
  %v144 = vand.u32 %v132, 2147483648
  %v145 = vor.u32 1.1754944e-38, %v144
  %v146 = vsel %vm143, %v145, %v141
  %v147 = vmul.f32 1.0, %v146
  %v148 = vtanh.pop %v128
  %v149 = vmul.f32 %v147, %v92
  %151 = vrot.lane.b32.xlu0 %v148, 64
  %v152 = vpop.permute.xlu0 %151
  %v154 = vmul.f32 %v147, %v152
  %156 = vrot.lane.b32.xlu0 %v154, 32
  %v157 = vpop.permute.xlu0 %156
  %v159 = vadd.f32 %v149, %v157
  %v160 = vtanh.pop %v159
  %162 = vrot.lane.b32.xlu0 %v160, 64
  %v163 = vpop.permute.xlu0 %162
  %v165 = vmul.f32 %v147, %v163
  %167 = vrot.lane.b32.xlu0 %v165, 32
  %v168 = vpop.permute.xlu0 %167
  %v170 = vadd.f32 %v103, %v168
  %s171 = scalar_lea.vmem %s0, 16
  %v172 = vld [vmem:[%s171] sm:$0xff]
  %v173 = vsel %vm33, %v168, 0
  %175 = vmatpush.msra.mxu0 0.0
  %176 = vmatpush.msra.mxu0 0.0
  %177 = vmatpush.msra.mxu0 0.0
  %178 = vmatpush.msra.mxu0 0.0
  %179 = vmatpush.msra.mxu0 0.0
  %180 = vmatpush.msra.mxu0 0.0
  %181 = vmatpush.msra.mxu0 0.0
  %182 = vmatpush.msra.mxu0 0.0
  %183 = vmatpush.msra.mxu0 0.0
  %184 = vmatpush.msra.mxu0 0.0
  %185 = vmatpush.msra.mxu0 0.0
  %186 = vmatpush.msra.mxu0 0.0
  %187 = vmatpush.msra.mxu0 %v28
  %188 = vmatpush.msra.mxu0 %v27
  %189 = vmatpush.msra.mxu0 %v26
  %190 = vmatpush.msra.mxu0 %v25
  %191 = vmatmul.f32.gmra.mxu0 %v173
  %v192 = vpop.f32.mrf.mxu0
  %v193 = vadd.f32 0.0, %v192
  %194 = vdwg.mxu0
  %v195 = vadd.f32 %v172, %v193
  %v196 = vxor.u32 %v195, 2147483648
  %v197 = vmul.f32 %v196, 1.442695
  %v198 = vpow.pop %v197
  %v199 = vadd.f32 %v198, 1.0
  %v200 = vrcp.pop %v199
  %v201 = vmul.f32 %v199, %v200
  %v202 = vsub.f32 1.0, %v201
  %v203 = vmul.f32 %v200, %v202
  %v204 = vadd.f32 %v200, %v203
  %vm205 = vweird.f32 %v199
  %vm206 = vweird.f32 %v200
  %vm207 = vmor %vm205, %vm206
  %v208 = vsel %vm207, %v200, %v204
  %v209 = vand.u32 2147483647, %v199
  %vm210 = vcmp.eq.f32.partialorder %v209, 8.507059e+37
  %v211 = vand.u32 %v199, 2147483648
  %v212 = vor.u32 1.1754944e-38, %v211
  %v213 = vsel %vm210, %v212, %v208
  %v214 = vmul.f32 1.0, %v213
  %v215 = vtanh.pop %v195
  %v216 = vmul.f32 %v214, %v159
  %218 = vrot.lane.b32.xlu0 %v215, 64
  %v219 = vpop.permute.xlu0 %218
  %v221 = vmul.f32 %v214, %v219
  %223 = vrot.lane.b32.xlu0 %v221, 32
  %v224 = vpop.permute.xlu0 %223
  %v226 = vadd.f32 %v216, %v224
  %v227 = vtanh.pop %v226
  %229 = vrot.lane.b32.xlu0 %v227, 64
  %v230 = vpop.permute.xlu0 %229
  %v232 = vmul.f32 %v214, %v230
  %234 = vrot.lane.b32.xlu0 %v232, 32
  %v235 = vpop.permute.xlu0 %234
  %v237 = vadd.f32 %v170, %v235
  %s238 = scalar_lea.vmem %s0, 24
  %v239 = vld [vmem:[%s238] sm:$0xff]
  %v240 = vsel %vm33, %v235, 0
  %242 = vmatpush.msra.mxu0 0.0
  %243 = vmatpush.msra.mxu0 0.0
  %244 = vmatpush.msra.mxu0 0.0
  %245 = vmatpush.msra.mxu0 0.0
  %246 = vmatpush.msra.mxu0 0.0
  %247 = vmatpush.msra.mxu0 0.0
  %248 = vmatpush.msra.mxu0 0.0
  %249 = vmatpush.msra.mxu0 0.0
  %250 = vmatpush.msra.mxu0 0.0
  %251 = vmatpush.msra.mxu0 0.0
  %252 = vmatpush.msra.mxu0 0.0
  %253 = vmatpush.msra.mxu0 0.0
  %254 = vmatpush.msra.mxu0 %v28
  %255 = vmatpush.msra.mxu0 %v27
  %256 = vmatpush.msra.mxu0 %v26
  %257 = vmatpush.msra.mxu0 %v25
  %258 = vmatmul.f32.gmra.mxu0 %v240
  %v259 = vpop.f32.mrf.mxu0
  %v260 = vadd.f32 0.0, %v259
  %261 = vdwg.mxu0
  %v262 = vadd.f32 %v239, %v260
  %v263 = vxor.u32 %v262, 2147483648
  %v264 = vmul.f32 %v263, 1.442695
  %v265 = vpow.pop %v264
  %v266 = vadd.f32 %v265, 1.0
  %v267 = vrcp.pop %v266
  %v268 = vmul.f32 %v266, %v267
  %v269 = vsub.f32 1.0, %v268
  %v270 = vmul.f32 %v267, %v269
  %v271 = vadd.f32 %v267, %v270
  %vm272 = vweird.f32 %v266
  %vm273 = vweird.f32 %v267
  %vm274 = vmor %vm272, %vm273
  %v275 = vsel %vm274, %v267, %v271
  %v276 = vand.u32 2147483647, %v266
  %vm277 = vcmp.eq.f32.partialorder %v276, 8.507059e+37
  %v278 = vand.u32 %v266, 2147483648
  %v279 = vor.u32 1.1754944e-38, %v278
  %v280 = vsel %vm277, %v279, %v275
  %v281 = vmul.f32 1.0, %v280
  %v282 = vtanh.pop %v262
  %v283 = vmul.f32 %v281, %v226
  %285 = vrot.lane.b32.xlu0 %v282, 64
  %v286 = vpop.permute.xlu0 %285
  %v288 = vmul.f32 %v281, %v286
  %290 = vrot.lane.b32.xlu0 %v288, 32
  %v291 = vpop.permute.xlu0 %290
  %v293 = vadd.f32 %v283, %v291
  %v294 = vtanh.pop %v293
  %296 = vrot.lane.b32.xlu0 %v294, 64
  %v297 = vpop.permute.xlu0 %296
  %v299 = vmul.f32 %v281, %v297
  %301 = vrot.lane.b32.xlu0 %v299, 32
  %v302 = vpop.permute.xlu0 %301
  %v304 = vadd.f32 %v237, %v302
  %s305 = scalar_lea.vmem %s0, 32
  %v306 = vld [vmem:[%s305] sm:$0xff]
  %v307 = vsel %vm33, %v302, 0
  %309 = vmatpush.msra.mxu0 0.0
  %310 = vmatpush.msra.mxu0 0.0
  %311 = vmatpush.msra.mxu0 0.0
  %312 = vmatpush.msra.mxu0 0.0
  %313 = vmatpush.msra.mxu0 0.0
  %314 = vmatpush.msra.mxu0 0.0
  %315 = vmatpush.msra.mxu0 0.0
  %316 = vmatpush.msra.mxu0 0.0
  %317 = vmatpush.msra.mxu0 0.0
  %318 = vmatpush.msra.mxu0 0.0
  %319 = vmatpush.msra.mxu0 0.0
  %320 = vmatpush.msra.mxu0 0.0
  %321 = vmatpush.msra.mxu0 %v28
  %322 = vmatpush.msra.mxu0 %v27
  %323 = vmatpush.msra.mxu0 %v26
  %324 = vmatpush.msra.mxu0 %v25
  %325 = vmatmul.f32.gmra.mxu0 %v307
  %v326 = vpop.f32.mrf.mxu0
  %v327 = vadd.f32 0.0, %v326
  %328 = vdwg.mxu0
  %v329 = vadd.f32 %v306, %v327
  %v330 = vxor.u32 %v329, 2147483648
  %v331 = vmul.f32 %v330, 1.442695
  %v332 = vpow.pop %v331
  %v333 = vadd.f32 %v332, 1.0
  %v334 = vrcp.pop %v333
  %v335 = vmul.f32 %v333, %v334
  %v336 = vsub.f32 1.0, %v335
  %v337 = vmul.f32 %v334, %v336
  %v338 = vadd.f32 %v334, %v337
  %vm339 = vweird.f32 %v333
  %vm340 = vweird.f32 %v334
  %vm341 = vmor %vm339, %vm340
  %v342 = vsel %vm341, %v334, %v338
  %v343 = vand.u32 2147483647, %v333
  %vm344 = vcmp.eq.f32.partialorder %v343, 8.507059e+37
  %v345 = vand.u32 %v333, 2147483648
  %v346 = vor.u32 1.1754944e-38, %v345
  %v347 = vsel %vm344, %v346, %v342
  %v348 = vmul.f32 1.0, %v347
  %v349 = vtanh.pop %v329
  %v350 = vmul.f32 %v348, %v293
  %352 = vrot.lane.b32.xlu0 %v349, 64
  %v353 = vpop.permute.xlu0 %352
  %v355 = vmul.f32 %v348, %v353
  %357 = vrot.lane.b32.xlu0 %v355, 32
  %v358 = vpop.permute.xlu0 %357
  %v360 = vadd.f32 %v350, %v358
  %v361 = vtanh.pop %v360
  %363 = vrot.lane.b32.xlu0 %v361, 64
  %v364 = vpop.permute.xlu0 %363
  %v366 = vmul.f32 %v348, %v364
  %368 = vrot.lane.b32.xlu0 %v366, 32
  %v369 = vpop.permute.xlu0 %368
  %v371 = vadd.f32 %v304, %v369
  %s372 = scalar_lea.vmem %s0, 40
  %v373 = vld [vmem:[%s372] sm:$0xff]
  %v374 = vsel %vm33, %v369, 0
  %376 = vmatpush.msra.mxu0 0.0
  %377 = vmatpush.msra.mxu0 0.0
  %378 = vmatpush.msra.mxu0 0.0
  %379 = vmatpush.msra.mxu0 0.0
  %380 = vmatpush.msra.mxu0 0.0
  %381 = vmatpush.msra.mxu0 0.0
  %382 = vmatpush.msra.mxu0 0.0
  %383 = vmatpush.msra.mxu0 0.0
  %384 = vmatpush.msra.mxu0 0.0
  %385 = vmatpush.msra.mxu0 0.0
  %386 = vmatpush.msra.mxu0 0.0
  %387 = vmatpush.msra.mxu0 0.0
  %388 = vmatpush.msra.mxu0 %v28
  %389 = vmatpush.msra.mxu0 %v27
  %390 = vmatpush.msra.mxu0 %v26
  %391 = vmatpush.msra.mxu0 %v25
  %392 = vmatmul.f32.gmra.mxu0 %v374
  %v393 = vpop.f32.mrf.mxu0
  %v394 = vadd.f32 0.0, %v393
  %395 = vdwg.mxu0
  %v396 = vadd.f32 %v373, %v394
  %v397 = vxor.u32 %v396, 2147483648
  %v398 = vmul.f32 %v397, 1.442695
  %v399 = vpow.pop %v398
  %v400 = vadd.f32 %v399, 1.0
  %v401 = vrcp.pop %v400
  %v402 = vmul.f32 %v400, %v401
  %v403 = vsub.f32 1.0, %v402
  %v404 = vmul.f32 %v401, %v403
  %v405 = vadd.f32 %v401, %v404
  %vm406 = vweird.f32 %v400
  %vm407 = vweird.f32 %v401
  %vm408 = vmor %vm406, %vm407
  %v409 = vsel %vm408, %v401, %v405
  %v410 = vand.u32 2147483647, %v400
  %vm411 = vcmp.eq.f32.partialorder %v410, 8.507059e+37
  %v412 = vand.u32 %v400, 2147483648
  %v413 = vor.u32 1.1754944e-38, %v412
  %v414 = vsel %vm411, %v413, %v409
  %v415 = vmul.f32 1.0, %v414
  %v416 = vtanh.pop %v396
  %v417 = vmul.f32 %v415, %v360
  %419 = vrot.lane.b32.xlu0 %v416, 64
  %v420 = vpop.permute.xlu0 %419
  %v422 = vmul.f32 %v415, %v420
  %424 = vrot.lane.b32.xlu0 %v422, 32
  %v425 = vpop.permute.xlu0 %424
  %v427 = vadd.f32 %v417, %v425
  %v428 = vtanh.pop %v427
  %430 = vrot.lane.b32.xlu0 %v428, 64
  %v431 = vpop.permute.xlu0 %430
  %v433 = vmul.f32 %v415, %v431
  %435 = vrot.lane.b32.xlu0 %v433, 32
  %v436 = vpop.permute.xlu0 %435
  %v438 = vadd.f32 %v371, %v436
  %s439 = scalar_lea.vmem %s0, 48
  %v440 = vld [vmem:[%s439] sm:$0xff]
  %v441 = vsel %vm33, %v436, 0
  %443 = vmatpush.msra.mxu0 0.0
  %444 = vmatpush.msra.mxu0 0.0
  %445 = vmatpush.msra.mxu0 0.0
  %446 = vmatpush.msra.mxu0 0.0
  %447 = vmatpush.msra.mxu0 0.0
  %448 = vmatpush.msra.mxu0 0.0
  %449 = vmatpush.msra.mxu0 0.0
  %450 = vmatpush.msra.mxu0 0.0
  %451 = vmatpush.msra.mxu0 0.0
  %452 = vmatpush.msra.mxu0 0.0
  %453 = vmatpush.msra.mxu0 0.0
  %454 = vmatpush.msra.mxu0 0.0
  %455 = vmatpush.msra.mxu0 %v28
  %456 = vmatpush.msra.mxu0 %v27
  %457 = vmatpush.msra.mxu0 %v26
  %458 = vmatpush.msra.mxu0 %v25
  %459 = vmatmul.f32.gmra.mxu0 %v441
  %v460 = vpop.f32.mrf.mxu0
  %v461 = vadd.f32 0.0, %v460
  %462 = vdwg.mxu0
  %v463 = vadd.f32 %v440, %v461
  %v464 = vxor.u32 %v463, 2147483648
  %v465 = vmul.f32 %v464, 1.442695
  %v466 = vpow.pop %v465
  %v467 = vadd.f32 %v466, 1.0
  %v468 = vrcp.pop %v467
  %v469 = vmul.f32 %v467, %v468
  %v470 = vsub.f32 1.0, %v469
  %v471 = vmul.f32 %v468, %v470
  %v472 = vadd.f32 %v468, %v471
  %vm473 = vweird.f32 %v467
  %vm474 = vweird.f32 %v468
  %vm475 = vmor %vm473, %vm474
  %v476 = vsel %vm475, %v468, %v472
  %v477 = vand.u32 2147483647, %v467
  %vm478 = vcmp.eq.f32.partialorder %v477, 8.507059e+37
  %v479 = vand.u32 %v467, 2147483648
  %v480 = vor.u32 1.1754944e-38, %v479
  %v481 = vsel %vm478, %v480, %v476
  %v482 = vmul.f32 1.0, %v481
  %v483 = vtanh.pop %v463
  %v484 = vmul.f32 %v482, %v427
  %486 = vrot.lane.b32.xlu0 %v483, 64
  %v487 = vpop.permute.xlu0 %486
  %v489 = vmul.f32 %v482, %v487
  %491 = vrot.lane.b32.xlu0 %v489, 32
  %v492 = vpop.permute.xlu0 %491
  %v494 = vadd.f32 %v484, %v492
  %v495 = vtanh.pop %v494
  %497 = vrot.lane.b32.xlu0 %v495, 64
  %v498 = vpop.permute.xlu0 %497
  %v500 = vmul.f32 %v482, %v498
  %502 = vrot.lane.b32.xlu0 %v500, 32
  %v503 = vpop.permute.xlu0 %502
  %v505 = vadd.f32 %v438, %v503
  %s506 = scalar_lea.vmem %s0, 56
  %v507 = vld [vmem:[%s506] sm:$0xff]
  %v508 = vsel %vm33, %v503, 0
  %510 = vmatpush.msra.mxu0 0.0
  %511 = vmatpush.msra.mxu0 0.0
  %512 = vmatpush.msra.mxu0 0.0
  %513 = vmatpush.msra.mxu0 0.0
  %514 = vmatpush.msra.mxu0 0.0
  %515 = vmatpush.msra.mxu0 0.0
  %516 = vmatpush.msra.mxu0 0.0
  %517 = vmatpush.msra.mxu0 0.0
  %518 = vmatpush.msra.mxu0 0.0
  %519 = vmatpush.msra.mxu0 0.0
  %520 = vmatpush.msra.mxu0 0.0
  %521 = vmatpush.msra.mxu0 0.0
  %522 = vmatpush.msra.mxu0 %v28
  %523 = vmatpush.msra.mxu0 %v27
  %524 = vmatpush.msra.mxu0 %v26
  %525 = vmatpush.msra.mxu0 %v25
  %526 = vmatmul.f32.gmra.mxu0 %v508
  %v527 = vpop.f32.mrf.mxu0
  %v528 = vadd.f32 0.0, %v527
  %529 = vdwg.mxu0
  %v530 = vadd.f32 %v507, %v528
  %v531 = vxor.u32 %v530, 2147483648
  %v532 = vmul.f32 %v531, 1.442695
  %v533 = vpow.pop %v532
  %v534 = vadd.f32 %v533, 1.0
  %v535 = vrcp.pop %v534
  %v536 = vmul.f32 %v534, %v535
  %v537 = vsub.f32 1.0, %v536
  %v538 = vmul.f32 %v535, %v537
  %v539 = vadd.f32 %v535, %v538
  %vm540 = vweird.f32 %v534
  %vm541 = vweird.f32 %v535
  %vm542 = vmor %vm540, %vm541
  %v543 = vsel %vm542, %v535, %v539
  %v544 = vand.u32 2147483647, %v534
  %vm545 = vcmp.eq.f32.partialorder %v544, 8.507059e+37
  %v546 = vand.u32 %v534, 2147483648
  %v547 = vor.u32 1.1754944e-38, %v546
  %v548 = vsel %vm545, %v547, %v543
  %v549 = vmul.f32 1.0, %v548
  %v550 = vtanh.pop %v530
  %v551 = vmul.f32 %v549, %v494
  %553 = vrot.lane.b32.xlu0 %v550, 64
  %v554 = vpop.permute.xlu0 %553
  %v556 = vmul.f32 %v549, %v554
  %558 = vrot.lane.b32.xlu0 %v556, 32
  %v559 = vpop.permute.xlu0 %558
  %v561 = vadd.f32 %v551, %v559
  %v562 = vtanh.pop %v561
  %564 = vrot.lane.b32.xlu0 %v562, 64
  %v565 = vpop.permute.xlu0 %564
  %v567 = vmul.f32 %v549, %v565
  %569 = vrot.lane.b32.xlu0 %v567, 32
  %v570 = vpop.permute.xlu0 %569
  %v572 = vadd.f32 %v505, %v570
  %573 = vst.msk [vmem:[#allocation2] sm:$0xff] %vm33, %v570
  %575 = vrot.lane.b32.xlu0 %v561, 96
  %v576 = vpop.permute.xlu0 %575
  %578 = vst.msk [vmem:[#allocation3] sm:$0xff] %vm33, %v576
  %579 = vst.msk [vmem:[#allocation4] sm:$0xff] %vm33, %v572
  // Predicated region
  $region22: #{bilstm_forward.1} parent=0 // pred_check
    %p580 = pneg %p17
  $region23: #{bilstm_forward.1} parent=0 // pred_check_branch
    %582 = sbr.rel (%p580) target = $region25
  $region24: #{bilstm_forward.1} parent=0 // pred_region
    %v583 = vld [vmem:[%s2] sm:$0xff]
    %v584 = vld [vmem:[%s2 + $0x8] sm:$0xff]
    %v585 = vld [vmem:[%s2 + $0x10] sm:$0xff]
    %v586 = vld [vmem:[%s2 + $0x18] sm:$0xff]
    %v587 = vld [vmem:[%s3] sm:$0x1]
    %v589 = vperm.slane %v587, 0
    %v592 = vsel %vm33, %v572, 0
    %594 = vmatpush.msra.mxu0 0.0
    %595 = vmatpush.msra.mxu0 0.0
    %596 = vmatpush.msra.mxu0 0.0
    %597 = vmatpush.msra.mxu0 0.0
    %598 = vmatpush.msra.mxu0 0.0
    %599 = vmatpush.msra.mxu0 0.0
    %600 = vmatpush.msra.mxu0 0.0
    %601 = vmatpush.msra.mxu0 0.0
    %602 = vmatpush.msra.mxu0 0.0
    %603 = vmatpush.msra.mxu0 0.0
    %604 = vmatpush.msra.mxu0 0.0
    %605 = vmatpush.msra.mxu0 0.0
    %606 = vmatpush.msra.mxu0 %v586
    %607 = vmatpush.msra.mxu0 %v585
    %608 = vmatpush.msra.mxu0 %v584
    %609 = vmatpush.msra.mxu0 %v583
    %610 = vmatmul.f32.gmra.mxu0 %v592
    %v611 = vpop.f32.mrf.mxu0
    %v612 = vadd.f32 %v589, %v611
    %613 = vdwg.mxu0
    %vm614 = vcmask 39936
    %615 = vst.msk [vmem:[%s4] sm:$0xff] %vm614, %v612
  $region25: #{bilstm_forward.1} parent=0 // pred_fallthru
    _
  // Predicated region
  $region26: #{bilstm_forward.1} parent=0 // pred_check
    _
  $region27: #{bilstm_forward.1} parent=0 // pred_check_branch
    %617 = sbr.rel (0) target = $region29
  $region28: #{bilstm_forward.1} parent=0 // pred_region
    _
  $region29: #{bilstm_forward.1} parent=0 // pred_fallthru
    _
  // Predicated region
  $region30: #{bilstm_forward.1} parent=0 // pred_check
    _
  $region31: #{bilstm_forward.1} parent=0 // pred_check_branch
    %619 = sbr.rel (0) target = $region33
  $region32: #{bilstm_forward.1} parent=0 // pred_region
    _
  $region33: #{bilstm_forward.1} parent=0 // pred_fallthru
    _

</llo_original>
